<compile_context>
chip_gen: v7x
topology: tpu7x:2x2x1
jax: 0.10.0
libtpu: 0.0.40
codegen_flags: <defaults>
</compile_context>

<pallas_src>
import functools

import jax
import jax.numpy as jnp
from jax.experimental import pallas as pl
from jax.experimental.pallas import tpu as pltpu

LANE = 128   # lane width (last-dim padding target for weights)
SUB = 8      # f32 sublane width (batch tile granularity)


def _round_up(x, m):
    return (x + m - 1) // m * m


def _cdiv(a, b):
    return -(-a // b)


def _dqn_mlp_kernel(x_ref, slab_ref, bias_ref, out_ref, *,
                    state_size, s_pad, action_size):
    """One batch tile through the whole 3-layer MLP.

    slab_ref rows (lane dim zero-padded to 128, compute dtype):
      [0, s_pad)               w1   (rows >= state_size are zero)
      [s_pad, s_pad+128)       w2
      [s_pad+128, s_pad+256)   w3
    bias_ref (f32, (8, 128)): row0 = b1, row1 = b2, row2 = b3 (lane-padded).
    """
    cdt = slab_ref.dtype
    # bf16 (or f32) cast happens here, on the VMEM tile -- no wrapper pass.
    x = x_ref[...].astype(cdt)                            # [tb, state_size]

    w1 = slab_ref[0:state_size, :]                        # [S, 128]
    w2 = slab_ref[s_pad:s_pad + LANE, :]                  # [128, 128]
    w3 = slab_ref[s_pad + LANE:s_pad + 2 * LANE, :]       # [128, 128]
    b1 = bias_ref[0:1, :]                                 # f32, [1, 128]
    b2 = bias_ref[1:2, :]
    b3 = bias_ref[2:3, :]

    # fc1 + ReLU: bf16 MXU matmul, f32 accumulation, f32 bias/ReLU epilogue.
    h1 = jnp.dot(x, w1, preferred_element_type=jnp.float32)
    h1 = jnp.maximum(h1 + b1, 0.0)
    # fc2 + ReLU.
    h2 = jnp.dot(h1.astype(cdt), w2, preferred_element_type=jnp.float32)
    h2 = jnp.maximum(h2 + b2, 0.0)
    # fc3: only the real action columns are stored (out block is (tb, A)),
    # cutting HBM writeback ~32x vs. a lane-dense [tb, 128] store.
    q = jnp.dot(h2.astype(cdt), w3, preferred_element_type=jnp.float32) + b3
    out_ref[...] = q[:, :action_size].astype(out_ref.dtype)


def pack_dqn_params(params, compute_dtype=jnp.bfloat16):
    """Pack w1|w2|w3 into one zero-padded [s_pad+256, 128] slab (compute
    dtype) plus a tiny separate f32 bias block (never rounded to bf16)."""
    w1, b1 = params["w1"], params["b1"]
    w2, b2 = params["w2"], params["b2"]
    w3, b3 = params["w3"], params["b3"]
    state_size, fc1 = w1.shape
    fc2 = w2.shape[1]
    action_size = w3.shape[1]
    assert fc1 <= LANE and fc2 <= LANE and action_size <= LANE, (
        "This packed kernel assumes hidden/action widths <= 128.")
    # Keep the w2/w3 slab sections 16-row aligned (bf16 sublane-packing tile).
    s_pad = _round_up(max(state_size, 16), 16)

    def pad2(a, rows, cols):
        return jnp.pad(a, ((0, rows - a.shape[0]), (0, cols - a.shape[1])))

    slab = jnp.concatenate(
        [pad2(w1, s_pad, LANE), pad2(w2, LANE, LANE), pad2(w3, LANE, LANE)],
        axis=0).astype(compute_dtype)

    bias = jnp.zeros((SUB, LANE), jnp.float32)
    bias = bias.at[0, :fc1].set(jnp.reshape(b1, (-1,)))
    bias = bias.at[1, :fc2].set(jnp.reshape(b2, (-1,)))
    bias = bias.at[2, :action_size].set(jnp.reshape(b3, (-1,)))
    return slab, bias, s_pad, state_size, action_size


def dqn_linear_forward(state, params, *, tile_b=2048,
                       compute_dtype=jnp.bfloat16):
    """state: [B, state_size].  Returns [B, action_size] f32 Q-values."""
    B, state_size = state.shape
    slab, bias, s_pad, packed_state_size, action_size = pack_dqn_params(
        params, compute_dtype)
    assert state_size == packed_state_size

    # Batch tiling: big tiles amortize per-grid-step overhead; for mid/large
    # batches cap the tile at ceil(B/2) so the "parallel" batch axis has at
    # least 2 tiles (engages both v7x TensorCores; no-op on v5e/v6e).
    tile_b = max(SUB, _round_up(tile_b, SUB))
    if B <= SUB:
        tb = B                                    # one block, dims == array
    else:
        tb = min(tile_b, _round_up(_cdiv(B, 2), SUB))
    grid_b = _cdiv(B, tb)

    kernel = functools.partial(_dqn_mlp_kernel, state_size=state_size,
                               s_pad=s_pad, action_size=action_size)
    # NOTE: slab/bias specs use constant index_maps, so they are DMA'd into
    # VMEM once and stay resident across the whole batch grid.  A second,
    # idle pipeline buffer (~70 KB bf16) is still allocated; if that ever
    # matters, add pipeline_mode=pl.Buffered(1) to those two specs.
    return pl.pallas_call(
        kernel,
        out_shape=jax.ShapeDtypeStruct((B, action_size), jnp.float32),
        grid=(grid_b,),
        in_specs=[
            # state: streamed one batch tile per grid step, no wrapper-side
            # pad/cast (ragged last block handled by Pallas; cast in-kernel).
            pl.BlockSpec((tb, state_size), lambda i: (i, 0)),
            # packed weight slab (compute dtype): VMEM-resident.
            pl.BlockSpec(slab.shape, lambda i: (0, 0)),
            # biases, kept f32 so bf16 mode never rounds them.
            pl.BlockSpec(bias.shape, lambda i: (0, 0)),
        ],
        # Only the real action columns are written: (B, A) f32 output and no
        # post-kernel slice pass over a padded slab.
        out_specs=pl.BlockSpec((tb, action_size), lambda i: (i, 0)),
        compiler_params=pltpu.CompilerParams(
            dimension_semantics=("parallel",),
            vmem_limit_bytes=32 * 1024 * 1024),
    )(state, slab, bias)


def init_dqn_linear_params(key, state_size, action_size,
                           fc1_units=64, fc2_units=64):
    """nn.Linear-style U(-1/sqrt(fan_in), 1/sqrt(fan_in)) init."""
    def linear(k, fan_in, fan_out):
        kw, kb = jax.random.split(k)
        bound = 1.0 / jnp.sqrt(jnp.float32(fan_in))
        w = jax.random.uniform(kw, (fan_in, fan_out), jnp.float32, -bound, bound)
        b = jax.random.uniform(kb, (1, fan_out), jnp.float32, -bound, bound)
        return w, b

    k1, k2, k3 = jax.random.split(key, 3)
    w1, b1 = linear(k1, state_size, fc1_units)
    w2, b2 = linear(k2, fc1_units, fc2_units)
    w3, b3 = linear(k3, fc2_units, action_size)
    return {"w1": w1, "b1": b1, "w2": w2, "b2": b2, "w3": w3, "b3": b3}


def dqn_linear_ref(state, params):
    """Pure-JAX f32 reference of the PyTorch forward."""
    x = jnp.maximum(state @ params["w1"] + params["b1"], 0.0)
    x = jnp.maximum(x @ params["w2"] + params["b2"], 0.0)
    return x @ params["w3"] + params["b3"]


def dqn_linear_ref_lowp(state, params, cdt=jnp.bfloat16):
    """Reference with the same rounding points as the bf16-mode kernel:
    bf16 matmul inputs, f32 accumulation, f32 bias/ReLU epilogues."""
    def dot(a, w):
        return jnp.dot(a.astype(cdt), w.astype(cdt),
                       preferred_element_type=jnp.float32)
    h1 = jnp.maximum(dot(state, params["w1"]) + params["b1"], 0.0)
    h2 = jnp.maximum(dot(h1, params["w2"]) + params["b2"], 0.0)
    return dot(h2, params["w3"]) + params["b3"]


if __name__ == "__main__":
    key = jax.random.PRNGKey(0)
    k_params, k_state1, k_state2 = jax.random.split(key, 3)

    state_size, action_size = 8, 4
    params = init_dqn_linear_params(k_params, state_size, action_size,
                                    fc1_units=64, fc2_units=64)

    fwd_bf16 = jax.jit(dqn_linear_forward)  # bf16 default (MXU-native)
    fwd_f32 = jax.jit(functools.partial(dqn_linear_forward,
                                        compute_dtype=jnp.float32))

    # Small case matching the original module usage (batch=2).
    state_small = jax.random.normal(k_state1, (2, state_size), jnp.float32)
    ref_small = dqn_linear_ref(state_small, params)

    out_small_f32 = jax.block_until_ready(fwd_f32(state_small, params))
    assert out_small_f32.shape == (2, action_size)
    assert jnp.allclose(out_small_f32, ref_small, atol=1e-5, rtol=1e-5)

    out_small_bf16 = jax.block_until_ready(fwd_bf16(state_small, params))
    ref_small_lowp = dqn_linear_ref_lowp(state_small, params)
    assert jnp.allclose(out_small_bf16, ref_small_lowp, atol=1e-2, rtol=1e-2)

    # Larger, non-multiple batch: exercises >=2 parallel batch tiles with a
    # ragged last block and the VMEM-resident weight slab.
    state_big = jax.random.normal(k_state2, (300, state_size), jnp.float32)
    ref_big = dqn_linear_ref(state_big, params)

    out_big_bf16 = jax.block_until_ready(fwd_bf16(state_big, params))
    assert out_big_bf16.shape == (300, action_size)
    assert jnp.allclose(out_big_bf16, dqn_linear_ref_lowp(state_big, params),
                        atol=1e-2, rtol=1e-2)

    out_big_f32 = jax.block_until_ready(fwd_f32(state_big, params))
    assert out_big_f32.shape == (300, action_size)
    assert jnp.allclose(out_big_f32, ref_big, atol=1e-5, rtol=1e-5)

    print("KERNEL_OK")
</pallas_src>

<mosaic_0001>
module attributes {stable_mosaic.version = 11 : i64} {
  func.func @_dqn_mlp_kernel(%arg0: i32, %arg1: memref<2x8xf32, #tpu.memory_space<vmem>>, %arg2: memref<272x128xf32, #tpu.memory_space<vmem>>, %arg3: memref<8x128xf32, #tpu.memory_space<vmem>>, %arg4: memref<2x4xf32, #tpu.memory_space<vmem>>) attributes {dimension_semantics = [#tpu.dimension_semantics<parallel>], iteration_bounds = array<i64: 1>, scalar_prefetch = 0 : i64, scratch_operands = 0 : i64, tpu.core_type = #tpu.core_type<tc>, window_params = [{transform_indices = @transform_0, window_bounds = array<i64: 2, 8>}, {pipeline_mode = #tpu.pipeline_mode<synchronous>, transform_indices = @transform_1, window_bounds = array<i64: 272, 128>}, {pipeline_mode = #tpu.pipeline_mode<synchronous>, transform_indices = @transform_2, window_bounds = array<i64: 8, 128>}, {transform_indices = @transform_3, window_bounds = array<i64: 2, 4>}]} {
    %c0 = arith.constant 0 : index
    %c0_0 = arith.constant 0 : index
    %0 = vector.load %arg1[%c0, %c0_0] : memref<2x8xf32, #tpu.memory_space<vmem>>, vector<2x8xf32>
    %c0_1 = arith.constant 0 : index
    %c0_2 = arith.constant 0 : index
    %1 = vector.load %arg2[%c0_1, %c0_2] : memref<272x128xf32, #tpu.memory_space<vmem>>, vector<8x128xf32>
    %c16 = arith.constant 16 : index
    %c0_3 = arith.constant 0 : index
    %2 = vector.load %arg2[%c16, %c0_3] : memref<272x128xf32, #tpu.memory_space<vmem>>, vector<128x128xf32>
    %c144 = arith.constant 144 : index
    %c0_4 = arith.constant 0 : index
    %3 = vector.load %arg2[%c144, %c0_4] : memref<272x128xf32, #tpu.memory_space<vmem>>, vector<128x128xf32>
    %c0_5 = arith.constant 0 : index
    %c0_6 = arith.constant 0 : index
    %4 = vector.load %arg3[%c0_5, %c0_6] : memref<8x128xf32, #tpu.memory_space<vmem>>, vector<1x128xf32>
    %c1 = arith.constant 1 : index
    %c0_7 = arith.constant 0 : index
    %5 = vector.load %arg3[%c1, %c0_7] : memref<8x128xf32, #tpu.memory_space<vmem>>, vector<1x128xf32>
    %c2 = arith.constant 2 : index
    %c0_8 = arith.constant 0 : index
    %6 = vector.load %arg3[%c2, %c0_8] : memref<8x128xf32, #tpu.memory_space<vmem>>, vector<1x128xf32>
    %cst = arith.constant dense<0.000000e+00> : vector<2x128xf32>
    %7 = tpu.matmul %0, %1, %cst {dimension_numbers = #tpu.dot_dimension_numbers<[1], [0], [0], [1], [0, 0, 1, 1], [], []>} : vector<2x8xf32>, vector<8x128xf32>, vector<2x128xf32> -> vector<2x128xf32>
    %8 = vector.broadcast %4 : vector<1x128xf32> to vector<2x128xf32>
    %9 = arith.addf %7, %8 : vector<2x128xf32>
    %cst_9 = arith.constant 0.000000e+00 : f32
    %10 = vector.broadcast %cst_9 : f32 to vector<2x128xf32>
    %11 = arith.maximumf %9, %10 : vector<2x128xf32>
    %cst_10 = arith.constant dense<0.000000e+00> : vector<2x128xf32>
    %12 = tpu.matmul %11, %2, %cst_10 {dimension_numbers = #tpu.dot_dimension_numbers<[1], [0], [0], [1], [0, 0, 1, 1], [], []>} : vector<2x128xf32>, vector<128x128xf32>, vector<2x128xf32> -> vector<2x128xf32>
    %13 = vector.broadcast %5 : vector<1x128xf32> to vector<2x128xf32>
    %14 = arith.addf %12, %13 : vector<2x128xf32>
    %cst_11 = arith.constant 0.000000e+00 : f32
    %15 = vector.broadcast %cst_11 : f32 to vector<2x128xf32>
    %16 = arith.maximumf %14, %15 : vector<2x128xf32>
    %cst_12 = arith.constant dense<0.000000e+00> : vector<2x128xf32>
    %17 = tpu.matmul %16, %3, %cst_12 {dimension_numbers = #tpu.dot_dimension_numbers<[1], [0], [0], [1], [0, 0, 1, 1], [], []>} : vector<2x128xf32>, vector<128x128xf32>, vector<2x128xf32> -> vector<2x128xf32>
    %18 = vector.broadcast %6 : vector<1x128xf32> to vector<2x128xf32>
    %19 = arith.addf %17, %18 : vector<2x128xf32>
    %20 = vector.extract_strided_slice %19 {offsets = [0, 0], sizes = [2, 4], strides = [1, 1]} : vector<2x128xf32> to vector<2x4xf32>
    %c0_13 = arith.constant 0 : index
    %c0_14 = arith.constant 0 : index
    %21 = vector.load %arg4[%c0_13, %c0_14] : memref<2x4xf32, #tpu.memory_space<vmem>>, vector<2x4xf32>
    tpu.vector_store %arg4[%c0_13, %c0_14], %20 {strides = array<i32>} : memref<2x4xf32, #tpu.memory_space<vmem>>, vector<2x4xf32>,
    return
  }
  func.func @transform_0(%arg0: i32) -> (i32, i32) {
    %c0_i32 = arith.constant 0 : i32
    %c0_i32_0 = arith.constant 0 : i32
    return %arg0, %c0_i32 : i32, i32
  }
  func.func @transform_1(%arg0: i32) -> (i32, i32) {
    %c0_i32 = arith.constant 0 : i32
    %c0_i32_0 = arith.constant 0 : i32
    %c0_i32_1 = arith.constant 0 : i32
    return %c0_i32, %c0_i32_0 : i32, i32
  }
  func.func @transform_2(%arg0: i32) -> (i32, i32) {
    %c0_i32 = arith.constant 0 : i32
    %c0_i32_0 = arith.constant 0 : i32
    %c0_i32_1 = arith.constant 0 : i32
    return %c0_i32, %c0_i32_0 : i32, i32
  }
  func.func @transform_3(%arg0: i32) -> (i32, i32) {
    %c0_i32 = arith.constant 0 : i32
    %c0_i32_0 = arith.constant 0 : i32
    return %arg0, %c0_i32 : i32, i32
  }
}

</mosaic_0001>

<llo_original>
// kernel: dqn_linear_forward.1
$region0: #{dqn_linear_forward.1}
  #allocation0 [shape = 'u32[]', space=smem, size = 0x4, offset = 0x4, fixed_abs, tag = 'smem constant byte address 0x4 - core index']
  #allocation1 [shape = 'u32[144,128]{1,0:T(1,128)}', space=vmem, size = 0x12000, scoped, tag = 'internal scratch']
  %s0 = inlined_call_operand.vmem [shape: f32[2,8], index: 0, kind: input, shape index: {}]
  %s1 = inlined_call_operand.vmem [shape: f32[272,128], index: 1, kind: input, shape index: {}]
  %s2 = inlined_call_operand.vmem [shape: f32[8,128], index: 2, kind: input, shape index: {}]
  %s3 = inlined_call_operand.hbm [shape: f32[2,4], index: 3, kind: output, shape index: {}]
  %s4 = sld [smem:[#allocation0]]
  $region22: #{dqn_linear_forward.1} parent=0
    _
  %s6 = ssub.s32 1, %s4
  %s7 = scalar_select 0, %s6, %s4
  $region1: #{dqn_linear_forward.1} parent=0
    #allocation2 [shape = 'u8[1024]{0}', space=vmem, size = 0x400, scoped, tag = 'output window, operand 0, single buffered']
    #allocation3 [shape = 's32[1]{0}', space=sflag, size = 0x4, scoped, tag = 'scoped memory for dqn_linear_forward.1']
    %8 = vsyncpa [#allocation3], 0
    // Predicated region
    $region2: #{dqn_linear_forward.1} parent=1 // pred_check
      _
    $region3: #{dqn_linear_forward.1} parent=1 // pred_check_branch
      %10 = sbr.rel (0) target = $region5
    $region4: #{dqn_linear_forward.1} parent=1 // pred_region
      _
    $region5: #{dqn_linear_forward.1} parent=1 // pred_fallthru
      _
    // Predicated region
    $region6: #{dqn_linear_forward.1} parent=1 // pred_check
      _
    $region7: #{dqn_linear_forward.1} parent=1 // pred_check_branch
      %12 = sbr.rel (0) target = $region9
    $region8: #{dqn_linear_forward.1} parent=1 // pred_region
      _
    $region9: #{dqn_linear_forward.1} parent=1 // pred_fallthru
      _
    // Predicated region
    $region10: #{dqn_linear_forward.1} parent=1 // pred_check
      _
    $region11: #{dqn_linear_forward.1} parent=1 // pred_check_branch
      %14 = sbr.rel (0) target = $region13
    $region12: #{dqn_linear_forward.1} parent=1 // pred_region
      _
    $region13: #{dqn_linear_forward.1} parent=1 // pred_fallthru
      _
    %v15 = vld [vmem:[%s0] sm:$0x3]
    %v16 = vld [vmem:[%s1] sm:$0xff]
    %v17 = vld [vmem:[%s1 + $0x10] sm:$0xff]
    %v18 = vld [vmem:[%s1 + $0x18] sm:$0xff]
    %v19 = vld [vmem:[%s1 + $0x20] sm:$0xff]
    %v20 = vld [vmem:[%s1 + $0x28] sm:$0xff]
    %v21 = vld [vmem:[%s1 + $0x30] sm:$0xff]
    %v22 = vld [vmem:[%s1 + $0x38] sm:$0xff]
    %v23 = vld [vmem:[%s1 + $0x40] sm:$0xff]
    %v24 = vld [vmem:[%s1 + $0x48] sm:$0xff]
    %v25 = vld [vmem:[%s1 + $0x50] sm:$0xff]
    %v26 = vld [vmem:[%s1 + $0x58] sm:$0xff]
    %v27 = vld [vmem:[%s1 + $0x60] sm:$0xff]
    %v28 = vld [vmem:[%s1 + $0x68] sm:$0xff]
    %v29 = vld [vmem:[%s1 + $0x70] sm:$0xff]
    %v30 = vld [vmem:[%s1 + $0x78] sm:$0xff]
    %v31 = vld [vmem:[%s1 + $0x80] sm:$0xff]
    %v32 = vld [vmem:[%s1 + $0x88] sm:$0xff]
    %v33 = vld [vmem:[%s1 + $0x90] sm:$0xff]
    %v34 = vld [vmem:[%s1 + $0x98] sm:$0xff]
    %v35 = vld [vmem:[%s1 + $0xa0] sm:$0xff]
    %v36 = vld [vmem:[%s1 + $0xa8] sm:$0xff]
    %v37 = vld [vmem:[%s1 + $0xb0] sm:$0xff]
    %v38 = vld [vmem:[%s1 + $0xb8] sm:$0xff]
    %v39 = vld [vmem:[%s1 + $0xc0] sm:$0xff]
    %v40 = vld [vmem:[%s1 + $0xc8] sm:$0xff]
    %v41 = vld [vmem:[%s1 + $0xd0] sm:$0xff]
    %v42 = vld [vmem:[%s1 + $0xd8] sm:$0xff]
    %v43 = vld [vmem:[%s1 + $0xe0] sm:$0xff]
    %v44 = vld [vmem:[%s1 + $0xe8] sm:$0xff]
    %v45 = vld [vmem:[%s1 + $0xf0] sm:$0xff]
    %v46 = vld [vmem:[%s1 + $0xf8] sm:$0xff]
    %v47 = vld [vmem:[%s1 + $0x100] sm:$0xff]
    %v48 = vld [vmem:[%s1 + $0x108] sm:$0xff]
    %v49 = vld [vmem:[%s2] sm:$0x1]
    %v50 = vld [vmem:[%s2 + $0x1] sm:$0x1]
    %v51 = vld [vmem:[%s2 + $0x2] sm:$0x1]
    %v52 = vlaneseq
    %v53 = vshrl.u32 %v52, 7
    %v54 = vsub.s32 0, %v53
    %v55 = vrot.slane %v49, %v54
    %vm56 = vcmask 64512
    %v58 = vsel %vm56, %v15, 0
    %60 = vmatprep.subr.mxu0 0.0
    %61 = vmatpush1.msra.mxu0 %v16
    %62 = vmatprep.subr.mxu0 0.0
    %63 = vmatpush1.msra.mxu0 0.0
    %64 = vmatprep.subr.mxu0 0.0
    %65 = vmatpush1.msra.mxu0 0.0
    %66 = vmatprep.subr.mxu0 0.0
    %67 = vmatpush1.msra.mxu0 0.0
    %68 = vmatprep.subr.mxu0 0.0
    %69 = vmatpush1.msra.mxu0 0.0
    %70 = vmatprep.subr.mxu0 0.0
    %71 = vmatpush1.msra.mxu0 0.0
    %72 = vmatprep.subr.mxu0 0.0
    %73 = vmatpush1.msra.mxu0 0.0
    %74 = vmatprep.subr.mxu0 0.0
    %75 = vmatpush1.msra.mxu0 0.0
    %76 = vmatprep.subr.mxu0 0.0
    %77 = vmatpush1.msra.mxu0 0.0
    %78 = vmatprep.subr.mxu0 0.0
    %79 = vmatpush1.msra.mxu0 0.0
    %80 = vmatprep.subr.mxu0 0.0
    %81 = vmatpush1.msra.mxu0 0.0
    %82 = vmatprep.subr.mxu0 0.0
    %83 = vmatpush1.msra.mxu0 0.0
    %84 = vmatprep.subr.mxu0 0.0
    %85 = vmatpush1.msra.mxu0 0.0
    %86 = vmatprep.subr.mxu0 0.0
    %87 = vmatpush1.msra.mxu0 0.0
    %88 = vmatprep.subr.mxu0 0.0
    %89 = vmatpush1.msra.mxu0 0.0
    %90 = vmatprep.subr.mxu0 0.0
    %91 = vmatpush1.msra.mxu0 0.0
    %92 = vmatprep.subr.mxu0 0.0
    %93 = vmatpush1.msra.mxu0 0.0
    %94 = vmatprep.subr.mxu0 0.0
    %95 = vmatpush1.msra.mxu0 0.0
    %96 = vmatprep.subr.mxu0 0.0
    %97 = vmatpush1.msra.mxu0 0.0
    %98 = vmatprep.subr.mxu0 0.0
    %99 = vmatpush1.msra.mxu0 0.0
    %100 = vmatprep.subr.mxu0 0.0
    %101 = vmatpush1.msra.mxu0 0.0
    %102 = vmatprep.subr.mxu0 0.0
    %103 = vmatpush1.msra.mxu0 0.0
    %104 = vmatprep.subr.mxu0 0.0
    %105 = vmatpush1.msra.mxu0 0.0
    %106 = vmatprep.subr.mxu0 0.0
    %107 = vmatpush1.msra.mxu0 0.0
    %108 = vmatprep.subr.mxu0 0.0
    %109 = vmatpush1.msra.mxu0 0.0
    %110 = vmatprep.subr.mxu0 0.0
    %111 = vmatpush1.msra.mxu0 0.0
    %112 = vmatprep.subr.mxu0 0.0
    %113 = vmatpush1.msra.mxu0 0.0
    %114 = vmatprep.subr.mxu0 0.0
    %115 = vmatpush1.msra.mxu0 0.0
    %116 = vmatprep.subr.mxu0 0.0
    %117 = vmatpush1.msra.mxu0 0.0
    %118 = vmatprep.subr.mxu0 0.0
    %119 = vmatpush1.msra.mxu0 0.0
    %120 = vmatprep.subr.mxu0 0.0
    %121 = vmatpush1.msra.mxu0 0.0
    %122 = vmatprep.subr.mxu0 0.0
    %123 = vmatpush1.msra.mxu0 0.0
    %124 = vmatprep.mubr.f32.mxu0 0.0
    %125 = vmatmul.mubr.f32.gmra.mrb[0].mxu0 %v58
    %v126 = vpop.f32.mrb[0].mxu0
    %v127 = vadd.f32 %v55, %v126
    %v128 = vpop.f32.mrb[0].mxu0
    %129 = vdwg.mxu0
    %v130 = vmax.f32 %v127, 0.0
    %v131 = vlaneseq
    %v132 = vshrl.u32 %v131, 7
    %v133 = vsub.s32 0, %v132
    %v134 = vrot.slane %v50, %v133
    %135 = vmatprep.subr.mxu0 0.0
    %136 = vmatpush1.msra.mxu0 %v17
    %137 = vmatprep.subr.mxu0 0.0
    %138 = vmatpush1.msra.mxu0 %v18
    %139 = vmatprep.subr.mxu0 0.0
    %140 = vmatpush1.msra.mxu0 %v19
    %141 = vmatprep.subr.mxu0 0.0
    %142 = vmatpush1.msra.mxu0 %v20
    %143 = vmatprep.subr.mxu0 0.0
    %144 = vmatpush1.msra.mxu0 %v21
    %145 = vmatprep.subr.mxu0 0.0
    %146 = vmatpush1.msra.mxu0 %v22
    %147 = vmatprep.subr.mxu0 0.0
    %148 = vmatpush1.msra.mxu0 %v23
    %149 = vmatprep.subr.mxu0 0.0
    %150 = vmatpush1.msra.mxu0 %v24
    %151 = vmatprep.subr.mxu0 0.0
    %152 = vmatpush1.msra.mxu0 %v25
    %153 = vmatprep.subr.mxu0 0.0
    %154 = vmatpush1.msra.mxu0 %v26
    %155 = vmatprep.subr.mxu0 0.0
    %156 = vmatpush1.msra.mxu0 %v27
    %157 = vmatprep.subr.mxu0 0.0
    %158 = vmatpush1.msra.mxu0 %v28
    %159 = vmatprep.subr.mxu0 0.0
    %160 = vmatpush1.msra.mxu0 %v29
    %161 = vmatprep.subr.mxu0 0.0
    %162 = vmatpush1.msra.mxu0 %v30
    %163 = vmatprep.subr.mxu0 0.0
    %164 = vmatpush1.msra.mxu0 %v31
    %165 = vmatprep.subr.mxu0 0.0
    %166 = vmatpush1.msra.mxu0 %v32
    %167 = vmatprep.subr.mxu0 0.0
    %168 = vmatpush1.msra.mxu0 0.0
    %169 = vmatprep.subr.mxu0 0.0
    %170 = vmatpush1.msra.mxu0 0.0
    %171 = vmatprep.subr.mxu0 0.0
    %172 = vmatpush1.msra.mxu0 0.0
    %173 = vmatprep.subr.mxu0 0.0
    %174 = vmatpush1.msra.mxu0 0.0
    %175 = vmatprep.subr.mxu0 0.0
    %176 = vmatpush1.msra.mxu0 0.0
    %177 = vmatprep.subr.mxu0 0.0
    %178 = vmatpush1.msra.mxu0 0.0
    %179 = vmatprep.subr.mxu0 0.0
    %180 = vmatpush1.msra.mxu0 0.0
    %181 = vmatprep.subr.mxu0 0.0
    %182 = vmatpush1.msra.mxu0 0.0
    %183 = vmatprep.subr.mxu0 0.0
    %184 = vmatpush1.msra.mxu0 0.0
    %185 = vmatprep.subr.mxu0 0.0
    %186 = vmatpush1.msra.mxu0 0.0
    %187 = vmatprep.subr.mxu0 0.0
    %188 = vmatpush1.msra.mxu0 0.0
    %189 = vmatprep.subr.mxu0 0.0
    %190 = vmatpush1.msra.mxu0 0.0
    %191 = vmatprep.subr.mxu0 0.0
    %192 = vmatpush1.msra.mxu0 0.0
    %193 = vmatprep.subr.mxu0 0.0
    %194 = vmatpush1.msra.mxu0 0.0
    %195 = vmatprep.subr.mxu0 0.0
    %196 = vmatpush1.msra.mxu0 0.0
    %197 = vmatprep.subr.mxu0 0.0
    %198 = vmatpush1.msra.mxu0 0.0
    %199 = vmatprep.mubr.f32.mxu0 0.0
    %200 = vmatmul.mubr.f32.gmra.mrb[0].mxu0 %v130
    %v201 = vpop.f32.mrb[0].mxu0
    %v202 = vadd.f32 %v134, %v201
    %v203 = vpop.f32.mrb[0].mxu0
    %204 = vdwg.mxu0
    %v205 = vmax.f32 %v202, 0.0
    %v206 = vlaneseq
    %v207 = vshrl.u32 %v206, 7
    %v208 = vsub.s32 0, %v207
    %v209 = vrot.slane %v51, %v208
    %210 = vmatprep.subr.mxu0 0.0
    %211 = vmatpush1.msra.mxu0 %v33
    %212 = vmatprep.subr.mxu0 0.0
    %213 = vmatpush1.msra.mxu0 %v34
    %214 = vmatprep.subr.mxu0 0.0
    %215 = vmatpush1.msra.mxu0 %v35
    %216 = vmatprep.subr.mxu0 0.0
    %217 = vmatpush1.msra.mxu0 %v36
    %218 = vmatprep.subr.mxu0 0.0
    %219 = vmatpush1.msra.mxu0 %v37
    %220 = vmatprep.subr.mxu0 0.0
    %221 = vmatpush1.msra.mxu0 %v38
    %222 = vmatprep.subr.mxu0 0.0
    %223 = vmatpush1.msra.mxu0 %v39
    %224 = vmatprep.subr.mxu0 0.0
    %225 = vmatpush1.msra.mxu0 %v40
    %226 = vmatprep.subr.mxu0 0.0
    %227 = vmatpush1.msra.mxu0 %v41
    %228 = vmatprep.subr.mxu0 0.0
    %229 = vmatpush1.msra.mxu0 %v42
    %230 = vmatprep.subr.mxu0 0.0
    %231 = vmatpush1.msra.mxu0 %v43
    %232 = vmatprep.subr.mxu0 0.0
    %233 = vmatpush1.msra.mxu0 %v44
    %234 = vmatprep.subr.mxu0 0.0
    %235 = vmatpush1.msra.mxu0 %v45
    %236 = vmatprep.subr.mxu0 0.0
    %237 = vmatpush1.msra.mxu0 %v46
    %238 = vmatprep.subr.mxu0 0.0
    %239 = vmatpush1.msra.mxu0 %v47
    %240 = vmatprep.subr.mxu0 0.0
    %241 = vmatpush1.msra.mxu0 %v48
    %242 = vmatprep.subr.mxu0 0.0
    %243 = vmatpush1.msra.mxu0 0.0
    %244 = vmatprep.subr.mxu0 0.0
    %245 = vmatpush1.msra.mxu0 0.0
    %246 = vmatprep.subr.mxu0 0.0
    %247 = vmatpush1.msra.mxu0 0.0
    %248 = vmatprep.subr.mxu0 0.0
    %249 = vmatpush1.msra.mxu0 0.0
    %250 = vmatprep.subr.mxu0 0.0
    %251 = vmatpush1.msra.mxu0 0.0
    %252 = vmatprep.subr.mxu0 0.0
    %253 = vmatpush1.msra.mxu0 0.0
    %254 = vmatprep.subr.mxu0 0.0
    %255 = vmatpush1.msra.mxu0 0.0
    %256 = vmatprep.subr.mxu0 0.0
    %257 = vmatpush1.msra.mxu0 0.0
    %258 = vmatprep.subr.mxu0 0.0
    %259 = vmatpush1.msra.mxu0 0.0
    %260 = vmatprep.subr.mxu0 0.0
    %261 = vmatpush1.msra.mxu0 0.0
    %262 = vmatprep.subr.mxu0 0.0
    %263 = vmatpush1.msra.mxu0 0.0
    %264 = vmatprep.subr.mxu0 0.0
    %265 = vmatpush1.msra.mxu0 0.0
    %266 = vmatprep.subr.mxu0 0.0
    %267 = vmatpush1.msra.mxu0 0.0
    %268 = vmatprep.subr.mxu0 0.0
    %269 = vmatpush1.msra.mxu0 0.0
    %270 = vmatprep.subr.mxu0 0.0
    %271 = vmatpush1.msra.mxu0 0.0
    %272 = vmatprep.subr.mxu0 0.0
    %273 = vmatpush1.msra.mxu0 0.0
    %274 = vmatprep.mubr.f32.mxu0 0.0
    %275 = vmatmul.mubr.f32.gmra.mrb[0].mxu0 %v205
    %v276 = vpop.f32.mrb[0].mxu0
    %v277 = vadd.f32 %v209, %v276
    %v278 = vpop.f32.mrb[0].mxu0
    %279 = vdwg.mxu0
    %vm280 = vcmask 25600
    %281 = vst.msk [vmem:[#allocation2] sm:$0x3] %vm280, %v277
    // Predicated region
    $region14: #{dqn_linear_forward.1} parent=1 // pred_check
      _
    $region15: #{dqn_linear_forward.1} parent=1 // pred_check_branch
      %283 = sbr.rel (0) target = $region17
    $region16: #{dqn_linear_forward.1} parent=1 // pred_region
      %s285 = ssub.s32 32, 32
      %286 = vsyncadd [#allocation3], %s285
      %s288 = sshll.u32 [#allocation2], 4
      %s289 = int_to_ptr.vmem [resolvable:$true] %s288
      %291 = dma.vmem_to_hbm [thread:$0]  %s289, 32, %s3, [#allocation3]
    $region17: #{dqn_linear_forward.1} parent=1 // pred_fallthru
      _
    // Predicated region
    $region18: #{dqn_linear_forward.1} parent=1 // pred_check
      _
    $region19: #{dqn_linear_forward.1} parent=1 // pred_check_branch
      %293 = sbr.rel (0) target = $region21
    $region20: #{dqn_linear_forward.1} parent=1 // pred_region
      %294 = dma.done [#allocation3], 32
    $region21: #{dqn_linear_forward.1} parent=1 // pred_fallthru
      _
    %295 = vsyncpa [#allocation3], 1

</llo_original>
